<compile_context>
chip_gen: v7x
topology: tpu7x:2x2x1
jax: 0.10.0
libtpu: 0.0.40
codegen_flags: <defaults>
</compile_context>

<pallas_src>
import functools

import jax
import jax.numpy as jnp
from jax import lax
from jax.experimental import pallas as pl
from jax.experimental.pallas import tpu as pltpu

HIDDEN = 10
IN_DIM = 2
OUT_DIM = 1
N_BLOCKS = 4
NUM_SLOTS = 2 + 2 * N_BLOCKS          # input layer + 8 hidden linears + output layer
AUG = HIDDEN + 1                       # hidden width + constant-ones row (bias fold)


def ritznet_kernel(x_ref, w_ref, o_ref):
    """One lane-dense batch tile of the full RitzNet forward pass.

    x_ref: (IN_DIM+1, tm) feature-major input tile, last row == 1.0 (bias row).
    w_ref: (NUM_SLOTS, AUG, AUG) packed bf16 weights; biases live in the last
           column, and row HIDDEN is a pass-through (or zero) row that keeps the
           constant-ones activation row alive through the network.
    o_ref: (OUT_DIM, tm) lane-dense output slab.
    """
    # bf16 streamed operand for the MXU; f32 accumulation via preferred_element_type.
    x_aug = x_ref[...].astype(jnp.bfloat16)                       # (3, tm)

    # input layer (+bias via ones row) + ReLU:  h -> (11, tm) f32, row 10 == 1
    w_in = w_ref[0, :, :IN_DIM + 1]                               # (11, 3) bf16
    h = jnp.maximum(jnp.dot(w_in, x_aug,
                            preferred_element_type=jnp.float32), 0.0)

    # 4 residual blocks, statically unrolled.  The 11x11 bf16 matmuls run on the
    # MXU (single pass, vs multi-pass f32) while ReLU/residual stay on the VPU
    # in f32.  The batch tile is the lane-dense MXU N dimension.
    # TODO(synk): if a v5e bundle dump shows the single vst slot binding, keep
    # h/y/z in bf16 between layers as well.
    for blk in range(N_BLOCKS):
        s1 = 1 + 2 * blk
        s2 = 2 + 2 * blk
        y = jnp.maximum(jnp.dot(w_ref[s1], h.astype(jnp.bfloat16),
                                preferred_element_type=jnp.float32), 0.0)
        z = jnp.maximum(jnp.dot(w_ref[s2], y.astype(jnp.bfloat16),
                                preferred_element_type=jnp.float32), 0.0)
        h = h + z          # f32 residual; ones row stays exactly 1 (z row 10 == 0)

    # output layer (no activation, bias folded): (1, 11) @ (11, tm) -> (1, tm)
    w_out = w_ref[NUM_SLOTS - 1, :OUT_DIM, :]                     # (1, 11) bf16
    out = jnp.dot(w_out, h.astype(jnp.bfloat16),
                  preferred_element_type=jnp.float32)
    o_ref[...] = out.astype(o_ref.dtype)                          # dense, unmasked store


def _round_up(a, m):
    return ((a + m - 1) // m) * m


@functools.partial(jax.jit, static_argnames=("tile_m",))
def ritznet_forward(x, w_pack, tile_m=16384):
    """x: (N, 2) float32 -> (N, 1) float32.  Handles ragged N via padding."""
    assert tile_m % 128 == 0, "tile_m must be a multiple of 128 (lane width)"
    n = x.shape[0]

    # Tile choice: cap at tile_m, but also cap at ~half the (lane-aligned) batch
    # so the grid has >=2 steps whenever possible and both v7x TensorCores get
    # work via dimension_semantics=("parallel",).
    n_pad128 = _round_up(n, 128)
    half = _round_up((n_pad128 + 1) // 2, 128)
    tm = max(128, min(tile_m, half))
    n_full = _round_up(n, tm)

    # Feature-major input slab with a constant-ones row appended (bias fold);
    # zero-pad the ragged tail (those columns are sliced off below).
    x_t = x.T.astype(jnp.float32)                                 # (2, N)
    ones = jnp.ones((1, n), jnp.float32)
    x_aug = jnp.concatenate([x_t, ones], axis=0)                  # (3, N)
    if n_full != n:
        x_aug = jnp.pad(x_aug, ((0, 0), (0, n_full - n)))

    grid = (n_full // tm,)

    out = pl.pallas_call(
        ritznet_kernel,
        out_shape=jax.ShapeDtypeStruct((OUT_DIM, n_full), jnp.float32),
        grid_spec=pltpu.PrefetchScalarGridSpec(
            num_scalar_prefetch=0,
            grid=grid,
            in_specs=[
                pl.BlockSpec((IN_DIM + 1, tm), lambda i: (0, i)),        # x tile
                pl.BlockSpec((NUM_SLOTS, AUG, AUG), lambda i: (0, 0, 0)),  # packed W|b
            ],
            out_specs=pl.BlockSpec((OUT_DIM, tm), lambda i: (0, i)),     # lane-dense
        ),
        compiler_params=pltpu.CompilerParams(
            # Shards grid steps across the two v7x TensorCores; no-op on v5e/v6e.
            # Default scoped VMEM limit is ample (~few MB footprint at tm=16384),
            # so no vmem_limit_bytes override (64 MiB would be ALL of v7x VMEM).
            dimension_semantics=("parallel",),
        ),
    )(x_aug, w_pack)

    return out[:, :n].T                                           # (N, 1)


def init_params(key):
    """Deterministic init matching torch.nn.Linear (weights kept as (out, in))."""
    keys = jax.random.split(key, 2 * (2 + 2 * N_BLOCKS))

    def linear(kw, kb, fan_in, fan_out):
        bound = 1.0 / (fan_in ** 0.5)
        w = jax.random.uniform(kw, (fan_out, fan_in), jnp.float32, -bound, bound)
        b = jax.random.uniform(kb, (fan_out,), jnp.float32, -bound, bound)
        return w, b

    w_in, b_in = linear(keys[0], keys[1], IN_DIM, HIDDEN)
    hidden = []
    for i in range(2 * N_BLOCKS):
        hidden.append(linear(keys[2 + 2 * i], keys[3 + 2 * i], HIDDEN, HIDDEN))
    w_out, b_out = linear(keys[-2], keys[-1], HIDDEN, OUT_DIM)
    return (w_in, b_in), hidden, (w_out, b_out)


def pack_params(params):
    """Pack all 10 linears (weights + folded biases) into one bf16 constant block.

    Layout per slot (AUG x AUG):
      rows 0..9, last column      -> bias
      row 10 (ones row)           -> pass-through (keeps the constant 1 alive) for
                                     layers whose output feeds another augmented
                                     matmul; all-zero for the second linear of a
                                     residual block so the residual add keeps the
                                     ones row at exactly 1.
    """
    (w_in, b_in), hidden, (w_out, b_out) = params
    w_pack = jnp.zeros((NUM_SLOTS, AUG, AUG), jnp.float32)

    # slot 0: input layer, cols 0..1 = W_in, col 2 = b_in, ones pass-through.
    w_pack = w_pack.at[0, :HIDDEN, :IN_DIM].set(w_in)
    w_pack = w_pack.at[0, :HIDDEN, IN_DIM].set(b_in)
    w_pack = w_pack.at[0, HIDDEN, IN_DIM].set(1.0)

    for i, (w, b) in enumerate(hidden):
        s = 1 + i
        w_pack = w_pack.at[s, :HIDDEN, :HIDDEN].set(w)
        w_pack = w_pack.at[s, :HIDDEN, HIDDEN].set(b)
        if i % 2 == 0:                      # first linear of a block: keep ones alive
            w_pack = w_pack.at[s, HIDDEN, HIDDEN].set(1.0)
        # second linear of a block: row HIDDEN stays zero -> z's ones row == 0.

    w_pack = w_pack.at[NUM_SLOTS - 1, :OUT_DIM, :HIDDEN].set(w_out)
    w_pack = w_pack.at[NUM_SLOTS - 1, :OUT_DIM, HIDDEN].set(b_out)
    return w_pack.astype(jnp.bfloat16)


def ritznet_ref(x, params):
    """Pure-JAX f32 reference (PyTorch semantics) for correctness checking."""
    (w_in, b_in), hidden, (w_out, b_out) = params
    hp = lax.Precision.HIGHEST
    h = jnp.maximum(jnp.dot(x, w_in.T, precision=hp) + b_in, 0.0)
    for blk in range(N_BLOCKS):
        w1, b1 = hidden[2 * blk]
        w2, b2 = hidden[2 * blk + 1]
        y = jnp.maximum(jnp.dot(h, w1.T, precision=hp) + b1, 0.0)
        z = jnp.maximum(jnp.dot(y, w2.T, precision=hp) + b2, 0.0)
        h = h + z
    return jnp.dot(h, w_out.T, precision=hp) + b_out


if __name__ == "__main__":
    key = jax.random.PRNGKey(0)
    k_param, k_x = jax.random.split(key)

    params = init_params(k_param)
    w_pack = pack_params(params)

    # Small, deliberately ragged batch of 2-D collocation points
    # (exercises the padding, multi-step grid, and lane-dense output path).
    n = 300
    x = jax.random.uniform(k_x, (n, IN_DIM), jnp.float32, -1.0, 1.0)

    out = ritznet_forward(x, w_pack)
    out = jax.block_until_ready(out)

    ref = ritznet_ref(x, params)
    assert out.shape == (n, OUT_DIM)
    # bf16 MXU operands (f32 accumulation) -> relaxed tolerance vs f32 reference.
    assert jnp.allclose(out, ref, atol=2e-2, rtol=2e-2), "mismatch vs reference"

    print("KERNEL_OK")
</pallas_src>

<mosaic_0001>
module attributes {stable_mosaic.version = 11 : i64} {
  func.func @ritznet_kernel(%arg0: i32, %arg1: memref<3x256xf32, #tpu.memory_space<vmem>>, %arg2: memref<10x11x11xbf16, #tpu.memory_space<vmem>>, %arg3: memref<1x256xf32, #tpu.memory_space<vmem>>) attributes {dimension_semantics = [#tpu.dimension_semantics<parallel>], iteration_bounds = array<i64: 2>, scalar_prefetch = 0 : i64, scratch_operands = 0 : i64, tpu.core_type = #tpu.core_type<tc>, window_params = [{transform_indices = @transform_0, window_bounds = array<i64: 3, 256>}, {pipeline_mode = #tpu.pipeline_mode<synchronous>, transform_indices = @transform_1, window_bounds = array<i64: 10, 11, 11>}, {transform_indices = @transform_2, window_bounds = array<i64: 1, 256>}]} {
    %c0 = arith.constant 0 : index
    %c0_0 = arith.constant 0 : index
    %0 = vector.load %arg1[%c0, %c0_0] : memref<3x256xf32, #tpu.memory_space<vmem>>, vector<3x256xf32>
    %1 = arith.truncf %0 : vector<3x256xf32> to vector<3x256xbf16>
    %c0_1 = arith.constant 0 : index
    %c0_2 = arith.constant 0 : index
    %c0_3 = arith.constant 0 : index
    %2 = vector.load %arg2[%c0_1, %c0_2, %c0_3] : memref<10x11x11xbf16, #tpu.memory_space<vmem>>, vector<1x11x3xbf16>
    %3 = vector.shape_cast %2 : vector<1x11x3xbf16> to vector<11x3xbf16>
    %cst = arith.constant dense<0.000000e+00> : vector<11x256xf32>
    %4 = tpu.matmul %3, %1, %cst {dimension_numbers = #tpu.dot_dimension_numbers<[1], [0], [0], [1], [0, 0, 1, 1], [], []>} : vector<11x3xbf16>, vector<3x256xbf16>, vector<11x256xf32> -> vector<11x256xf32>
    %cst_4 = arith.constant 0.000000e+00 : f32
    %5 = vector.broadcast %cst_4 : f32 to vector<11x256xf32>
    %6 = arith.maximumf %4, %5 : vector<11x256xf32>
    %c1 = arith.constant 1 : index
    %c0_5 = arith.constant 0 : index
    %c0_6 = arith.constant 0 : index
    %7 = vector.load %arg2[%c1, %c0_5, %c0_6] : memref<10x11x11xbf16, #tpu.memory_space<vmem>>, vector<1x11x11xbf16>
    %8 = vector.shape_cast %7 : vector<1x11x11xbf16> to vector<11x11xbf16>
    %9 = arith.truncf %6 : vector<11x256xf32> to vector<11x256xbf16>
    %cst_7 = arith.constant dense<0.000000e+00> : vector<11x256xf32>
    %10 = tpu.matmul %8, %9, %cst_7 {dimension_numbers = #tpu.dot_dimension_numbers<[1], [0], [0], [1], [0, 0, 1, 1], [], []>} : vector<11x11xbf16>, vector<11x256xbf16>, vector<11x256xf32> -> vector<11x256xf32>
    %cst_8 = arith.constant 0.000000e+00 : f32
    %11 = vector.broadcast %cst_8 : f32 to vector<11x256xf32>
    %12 = arith.maximumf %10, %11 : vector<11x256xf32>
    %c2 = arith.constant 2 : index
    %c0_9 = arith.constant 0 : index
    %c0_10 = arith.constant 0 : index
    %13 = vector.load %arg2[%c2, %c0_9, %c0_10] : memref<10x11x11xbf16, #tpu.memory_space<vmem>>, vector<1x11x11xbf16>
    %14 = vector.shape_cast %13 : vector<1x11x11xbf16> to vector<11x11xbf16>
    %15 = arith.truncf %12 : vector<11x256xf32> to vector<11x256xbf16>
    %cst_11 = arith.constant dense<0.000000e+00> : vector<11x256xf32>
    %16 = tpu.matmul %14, %15, %cst_11 {dimension_numbers = #tpu.dot_dimension_numbers<[1], [0], [0], [1], [0, 0, 1, 1], [], []>} : vector<11x11xbf16>, vector<11x256xbf16>, vector<11x256xf32> -> vector<11x256xf32>
    %cst_12 = arith.constant 0.000000e+00 : f32
    %17 = vector.broadcast %cst_12 : f32 to vector<11x256xf32>
    %18 = arith.maximumf %16, %17 : vector<11x256xf32>
    %19 = arith.addf %6, %18 : vector<11x256xf32>
    %c3 = arith.constant 3 : index
    %c0_13 = arith.constant 0 : index
    %c0_14 = arith.constant 0 : index
    %20 = vector.load %arg2[%c3, %c0_13, %c0_14] : memref<10x11x11xbf16, #tpu.memory_space<vmem>>, vector<1x11x11xbf16>
    %21 = vector.shape_cast %20 : vector<1x11x11xbf16> to vector<11x11xbf16>
    %22 = arith.truncf %19 : vector<11x256xf32> to vector<11x256xbf16>
    %cst_15 = arith.constant dense<0.000000e+00> : vector<11x256xf32>
    %23 = tpu.matmul %21, %22, %cst_15 {dimension_numbers = #tpu.dot_dimension_numbers<[1], [0], [0], [1], [0, 0, 1, 1], [], []>} : vector<11x11xbf16>, vector<11x256xbf16>, vector<11x256xf32> -> vector<11x256xf32>
    %cst_16 = arith.constant 0.000000e+00 : f32
    %24 = vector.broadcast %cst_16 : f32 to vector<11x256xf32>
    %25 = arith.maximumf %23, %24 : vector<11x256xf32>
    %c4 = arith.constant 4 : index
    %c0_17 = arith.constant 0 : index
    %c0_18 = arith.constant 0 : index
    %26 = vector.load %arg2[%c4, %c0_17, %c0_18] : memref<10x11x11xbf16, #tpu.memory_space<vmem>>, vector<1x11x11xbf16>
    %27 = vector.shape_cast %26 : vector<1x11x11xbf16> to vector<11x11xbf16>
    %28 = arith.truncf %25 : vector<11x256xf32> to vector<11x256xbf16>
    %cst_19 = arith.constant dense<0.000000e+00> : vector<11x256xf32>
    %29 = tpu.matmul %27, %28, %cst_19 {dimension_numbers = #tpu.dot_dimension_numbers<[1], [0], [0], [1], [0, 0, 1, 1], [], []>} : vector<11x11xbf16>, vector<11x256xbf16>, vector<11x256xf32> -> vector<11x256xf32>
    %cst_20 = arith.constant 0.000000e+00 : f32
    %30 = vector.broadcast %cst_20 : f32 to vector<11x256xf32>
    %31 = arith.maximumf %29, %30 : vector<11x256xf32>
    %32 = arith.addf %19, %31 : vector<11x256xf32>
    %c5 = arith.constant 5 : index
    %c0_21 = arith.constant 0 : index
    %c0_22 = arith.constant 0 : index
    %33 = vector.load %arg2[%c5, %c0_21, %c0_22] : memref<10x11x11xbf16, #tpu.memory_space<vmem>>, vector<1x11x11xbf16>
    %34 = vector.shape_cast %33 : vector<1x11x11xbf16> to vector<11x11xbf16>
    %35 = arith.truncf %32 : vector<11x256xf32> to vector<11x256xbf16>
    %cst_23 = arith.constant dense<0.000000e+00> : vector<11x256xf32>
    %36 = tpu.matmul %34, %35, %cst_23 {dimension_numbers = #tpu.dot_dimension_numbers<[1], [0], [0], [1], [0, 0, 1, 1], [], []>} : vector<11x11xbf16>, vector<11x256xbf16>, vector<11x256xf32> -> vector<11x256xf32>
    %cst_24 = arith.constant 0.000000e+00 : f32
    %37 = vector.broadcast %cst_24 : f32 to vector<11x256xf32>
    %38 = arith.maximumf %36, %37 : vector<11x256xf32>
    %c6 = arith.constant 6 : index
    %c0_25 = arith.constant 0 : index
    %c0_26 = arith.constant 0 : index
    %39 = vector.load %arg2[%c6, %c0_25, %c0_26] : memref<10x11x11xbf16, #tpu.memory_space<vmem>>, vector<1x11x11xbf16>
    %40 = vector.shape_cast %39 : vector<1x11x11xbf16> to vector<11x11xbf16>
    %41 = arith.truncf %38 : vector<11x256xf32> to vector<11x256xbf16>
    %cst_27 = arith.constant dense<0.000000e+00> : vector<11x256xf32>
    %42 = tpu.matmul %40, %41, %cst_27 {dimension_numbers = #tpu.dot_dimension_numbers<[1], [0], [0], [1], [0, 0, 1, 1], [], []>} : vector<11x11xbf16>, vector<11x256xbf16>, vector<11x256xf32> -> vector<11x256xf32>
    %cst_28 = arith.constant 0.000000e+00 : f32
    %43 = vector.broadcast %cst_28 : f32 to vector<11x256xf32>
    %44 = arith.maximumf %42, %43 : vector<11x256xf32>
    %45 = arith.addf %32, %44 : vector<11x256xf32>
    %c7 = arith.constant 7 : index
    %c0_29 = arith.constant 0 : index
    %c0_30 = arith.constant 0 : index
    %46 = vector.load %arg2[%c7, %c0_29, %c0_30] : memref<10x11x11xbf16, #tpu.memory_space<vmem>>, vector<1x11x11xbf16>
    %47 = vector.shape_cast %46 : vector<1x11x11xbf16> to vector<11x11xbf16>
    %48 = arith.truncf %45 : vector<11x256xf32> to vector<11x256xbf16>
    %cst_31 = arith.constant dense<0.000000e+00> : vector<11x256xf32>
    %49 = tpu.matmul %47, %48, %cst_31 {dimension_numbers = #tpu.dot_dimension_numbers<[1], [0], [0], [1], [0, 0, 1, 1], [], []>} : vector<11x11xbf16>, vector<11x256xbf16>, vector<11x256xf32> -> vector<11x256xf32>
    %cst_32 = arith.constant 0.000000e+00 : f32
    %50 = vector.broadcast %cst_32 : f32 to vector<11x256xf32>
    %51 = arith.maximumf %49, %50 : vector<11x256xf32>
    %c8 = arith.constant 8 : index
    %c0_33 = arith.constant 0 : index
    %c0_34 = arith.constant 0 : index
    %52 = vector.load %arg2[%c8, %c0_33, %c0_34] : memref<10x11x11xbf16, #tpu.memory_space<vmem>>, vector<1x11x11xbf16>
    %53 = vector.shape_cast %52 : vector<1x11x11xbf16> to vector<11x11xbf16>
    %54 = arith.truncf %51 : vector<11x256xf32> to vector<11x256xbf16>
    %cst_35 = arith.constant dense<0.000000e+00> : vector<11x256xf32>
    %55 = tpu.matmul %53, %54, %cst_35 {dimension_numbers = #tpu.dot_dimension_numbers<[1], [0], [0], [1], [0, 0, 1, 1], [], []>} : vector<11x11xbf16>, vector<11x256xbf16>, vector<11x256xf32> -> vector<11x256xf32>
    %cst_36 = arith.constant 0.000000e+00 : f32
    %56 = vector.broadcast %cst_36 : f32 to vector<11x256xf32>
    %57 = arith.maximumf %55, %56 : vector<11x256xf32>
    %58 = arith.addf %45, %57 : vector<11x256xf32>
    %c9 = arith.constant 9 : index
    %c0_37 = arith.constant 0 : index
    %c0_38 = arith.constant 0 : index
    %59 = vector.load %arg2[%c9, %c0_37, %c0_38] : memref<10x11x11xbf16, #tpu.memory_space<vmem>>, vector<1x1x11xbf16>
    %60 = vector.shape_cast %59 : vector<1x1x11xbf16> to vector<1x11xbf16>
    %61 = arith.truncf %58 : vector<11x256xf32> to vector<11x256xbf16>
    %cst_39 = arith.constant dense<0.000000e+00> : vector<1x256xf32>
    %62 = tpu.matmul %60, %61, %cst_39 {dimension_numbers = #tpu.dot_dimension_numbers<[1], [0], [0], [1], [0, 0, 1, 1], [], []>} : vector<1x11xbf16>, vector<11x256xbf16>, vector<1x256xf32> -> vector<1x256xf32>
    %c0_40 = arith.constant 0 : index
    %c0_41 = arith.constant 0 : index
    %63 = vector.load %arg3[%c0_40, %c0_41] : memref<1x256xf32, #tpu.memory_space<vmem>>, vector<1x256xf32>
    tpu.vector_store %arg3[%c0_40, %c0_41], %62 {strides = array<i32>} : memref<1x256xf32, #tpu.memory_space<vmem>>, vector<1x256xf32>,
    return
  }
  func.func @transform_0(%arg0: i32) -> (i32, i32) {
    %c0_i32 = arith.constant 0 : i32
    %c0_i32_0 = arith.constant 0 : i32
    return %c0_i32, %arg0 : i32, i32
  }
  func.func @transform_1(%arg0: i32) -> (i32, i32, i32) {
    %c0_i32 = arith.constant 0 : i32
    %c0_i32_0 = arith.constant 0 : i32
    %c0_i32_1 = arith.constant 0 : i32
    %c0_i32_2 = arith.constant 0 : i32
    return %c0_i32, %c0_i32_0, %c0_i32_1 : i32, i32, i32
  }
  func.func @transform_2(%arg0: i32) -> (i32, i32) {
    %c0_i32 = arith.constant 0 : i32
    %c0_i32_0 = arith.constant 0 : i32
    return %c0_i32, %arg0 : i32, i32
  }
}

</mosaic_0001>

<llo_original>
// kernel: ritznet_forward.1
$region0: #{ritznet_forward.1}
  #allocation0 [shape = 'u32[]', space=smem, size = 0x4, offset = 0x4, fixed_abs, tag = 'smem constant byte address 0x4 - core index']
  #allocation1 [shape = 'u32[144,128]{1,0:T(1,128)}', space=vmem, size = 0x12000, scoped, tag = 'internal scratch']
  %s0 = inlined_call_operand.vmem [shape: f32[3,512], index: 0, kind: input, shape index: {}]
  %s1 = inlined_call_operand.hbm [shape: bf16[10,11,11], index: 1, kind: input, shape index: {}]
  %s2 = inlined_call_operand.vmem [shape: f32[1,512], index: 2, kind: output, shape index: {}]
  %s3 = sld [smem:[#allocation0]]
  $region45: #{ritznet_forward.1} parent=0
    _
  %s5 = ssub.s32 1, %s3
  %s6 = scalar_select 0, %s5, %s3
  $region1: #{ritznet_forward.1} parent=0
    #allocation2 [shape = 'u8[40960]{0}', space=vmem, size = 0xa000, scoped, tag = 'input window, operand 1, single buffered']
    #allocation3 [shape = 's32[2]{0}', space=sflag, size = 0x8, scoped, tag = 'scoped memory for ritznet_forward.1']
    %7 = vsyncpa [#allocation3], 0
    loop: start=0, step=1, limit=4
    $region2: #{ritznet_forward.1} parent=1 // loop_pre_header
      _
    $region3: #{ritznet_forward.1} parent=1 // loop_header
      %s9 = sphi 0, %s13
      %p10 = scmp.ge.s32.totalorder %s9, 4
      %s19 = sphi 0, %s21
      %s22 = sphi 0, %s19
      %s23 = sphi 0, %s22
      %s39 = sphi 0, %s23
      %s43 = sphi 0, %s43
      %s45 = sphi 0, %s43
      %s46 = sphi 0, %s45
      %s60 = sphi 0, %s46
      %s66 = sphi 0, %s68
      %s69 = sphi 0, %s66
      %s70 = sphi 0, %s69
      %s86 = sphi 0, %s70
    $region4: #{ritznet_forward.1} parent=1 // loop_header_branch
      %12 = sbr.rel (%p10) target = $region8
    $region5: #{ritznet_forward.1} parent=1 // loop_body
      %s14 = ssub.s32 %s9, 1
      %s15 = ssub.s32 %s9, 2
      %s16 = sadd.s32 %s9, 1
      %s17 = ssub.s32 %s9, %s16
      %p18 = scmp.eq.s32.totalorder %s17, 0
      %s20 = sadd.s32 %s19, 1
      %s21 = scalar_select %p18, %s19, %s20
      %p24 = pneg %p18
      %p25 = scmp.eq.s32.totalorder %s9, 1
      %p26 = por %p24, %p25
      %p27 = scmp.ne.s32.totalorder %s19, %s22
      %p28 = scmp.eq.s32.totalorder %s9, 0
      %p29 = por %p27, %p28
      %p30 = scmp.ne.s32.totalorder %s19, %s22
      %p31 = scmp.eq.s32.totalorder %s14, 1
      %p32 = por %p30, %p31
      %p33 = scmp.ne.s32.totalorder %s22, %s23
      %p34 = scmp.eq.s32.totalorder %s14, 0
      %p35 = por %p33, %p34
      %p36 = scmp.ne.s32.totalorder %s22, %s23
      %p37 = scmp.eq.s32.totalorder %s15, 1
      %p38 = por %p36, %p37
      %p40 = scmp.ne.s32.totalorder %s23, %s39
      %p41 = scmp.eq.s32.totalorder %s15, 0
      %p42 = por %p40, %p41
      %s44 = sadd.s32 %s43, 1
      %p47 = scmp.eq.s32.totalorder %s9, 1
      %p48 = scmp.ne.s32.totalorder %s43, %s45
      %p49 = scmp.eq.s32.totalorder %s9, 0
      %p50 = por %p48, %p49
      %p51 = scmp.ne.s32.totalorder %s43, %s45
      %p52 = scmp.eq.s32.totalorder %s14, 1
      %p53 = por %p51, %p52
      %p54 = scmp.ne.s32.totalorder %s45, %s46
      %p55 = scmp.eq.s32.totalorder %s14, 0
      %p56 = por %p54, %p55
      %p57 = scmp.ne.s32.totalorder %s45, %s46
      %p58 = scmp.eq.s32.totalorder %s15, 1
      %p59 = por %p57, %p58
      %p61 = scmp.ne.s32.totalorder %s46, %s60
      %p62 = scmp.eq.s32.totalorder %s15, 0
      %p63 = por %p61, %p62
      %s64 = ssub.s32 %s9, %s16
      %p65 = scmp.eq.s32.totalorder %s64, 0
      %s67 = sadd.s32 %s66, 1
      %s68 = scalar_select %p65, %s66, %s67
      %p71 = pneg %p65
      %p72 = scmp.eq.s32.totalorder %s9, 1
      %p73 = por %p71, %p72
      %p74 = scmp.ne.s32.totalorder %s66, %s69
      %p75 = scmp.eq.s32.totalorder %s9, 0
      %p76 = por %p74, %p75
      %p77 = scmp.ne.s32.totalorder %s66, %s69
      %p78 = scmp.eq.s32.totalorder %s14, 1
      %p79 = por %p77, %p78
      %p80 = scmp.ne.s32.totalorder %s69, %s70
      %p81 = scmp.eq.s32.totalorder %s14, 0
      %p82 = por %p80, %p81
      %p83 = scmp.ne.s32.totalorder %s69, %s70
      %p84 = scmp.eq.s32.totalorder %s15, 1
      %p85 = por %p83, %p84
      %p87 = scmp.ne.s32.totalorder %s70, %s86
      %p88 = scmp.eq.s32.totalorder %s15, 0
      %p89 = por %p87, %p88
      %p90 = scmp.le.s32.totalorder 1, %s9
      %p91 = scmp.lt.s32.totalorder %s9, 3
      %p92 = pnand %p90, %p91
      %p93 = pneg %p92
      // Predicated region
      $region9: #{ritznet_forward.1} parent=5 // pred_check
        _
      $region10: #{ritznet_forward.1} parent=5 // pred_check_branch
        %95 = sbr.rel (%p92) target = $region12
      $region11: #{ritznet_forward.1} parent=5 // pred_region
        %s96 = ssub.s32 %s9, 1
        // Predicated region
        $region13: #{ritznet_forward.1} parent=11 // pred_check
          %p97 = pneg %p56
        $region14: #{ritznet_forward.1} parent=11 // pred_check_branch
          %99 = sbr.rel (%p97) target = $region16
        $region15: #{ritznet_forward.1} parent=11 // pred_region
          %s101 = ssub.s32 1280, 1280
          %102 = vsyncadd [#allocation3], %s101
          %s103 = sshll.u32 [#allocation2], 4
          %s104 = int_to_ptr.vmem [resolvable:$true] %s103
          %109 = dma.hbm_to_vmem [thread:$0]  %s1, 1280, %s104, [#allocation3], 64, 64, 4
        $region16: #{ritznet_forward.1} parent=11 // pred_fallthru
          _
      $region12: #{ritznet_forward.1} parent=5 // pred_fallthru
        _
      %p110 = scmp.lt.s32.totalorder %s9, 2
      // Predicated region
      $region17: #{ritznet_forward.1} parent=5 // pred_check
        %p111 = pneg %p110
      $region18: #{ritznet_forward.1} parent=5 // pred_check_branch
        %113 = sbr.rel (%p111) target = $region20
      $region19: #{ritznet_forward.1} parent=5 // pred_region
        // Predicated region
        $region21: #{ritznet_forward.1} parent=19 // pred_check
          %p114 = pneg %p29
        $region22: #{ritznet_forward.1} parent=19 // pred_check_branch
          %116 = sbr.rel (%p114) target = $region24
        $region23: #{ritznet_forward.1} parent=19 // pred_region
          %s117 = smul.u32 2, %s9
          %p118 = scmp.lt.s32.totalorder %s117, 3
          %s119 = scalar_select %p118, %s117, 3
          %s120 = smul.addr %s119, 4
          %s121 = scalar_lea.vmem %s0, %s120
          %s122 = smul.u32 2, %s9
        $region24: #{ritznet_forward.1} parent=19 // pred_fallthru
          _
      $region20: #{ritznet_forward.1} parent=5 // pred_fallthru
        _
      %p123 = scmp.le.s32.totalorder 1, %s9
      %p124 = scmp.lt.s32.totalorder %s9, 3
      %p125 = pnand %p123, %p124
      %p126 = pneg %p125
      // Predicated region
      $region25: #{ritznet_forward.1} parent=5 // pred_check
        _
      $region26: #{ritznet_forward.1} parent=5 // pred_check_branch
        %128 = sbr.rel (%p125) target = $region28
      $region27: #{ritznet_forward.1} parent=5 // pred_region
        %s129 = ssub.s32 %s9, 1
        // Predicated region
        $region29: #{ritznet_forward.1} parent=27 // pred_check
          %p130 = pneg %p56
        $region30: #{ritznet_forward.1} parent=27 // pred_check_branch
          %132 = sbr.rel (%p130) target = $region32
        $region31: #{ritznet_forward.1} parent=27 // pred_region
          %133 = dma.done [#allocation3], 1280
        $region32: #{ritznet_forward.1} parent=27 // pred_fallthru
          _
        %s134 = smul.u32 2, %s14
        %p135 = scmp.lt.s32.totalorder %s134, 3
        %s136 = scalar_select %p135, %s134, 3
        %s137 = smul.addr %s136, 4
        %s138 = scalar_lea.vmem %s0, %s137
        %p139 = pneg %p35
        %p140 = pneg %p32
        %p141 = pneg %p56
        %p142 = pneg %p53
        %p143 = pneg %p82
        %p144 = pneg %p79
        %s145 = smul.u32 2, %s14
        %p146 = scmp.lt.s32.totalorder %s145, 3
        %s147 = scalar_select %p146, %s145, 3
        %s148 = scalar_lea.vmem %s2, %s147
        %s149 = smul.u32 2, %s14
        %p150 = scmp.lt.s32.totalorder %s149, 3
        %s151 = scalar_select %p150, %s149, 3
        %s152 = smul.addr %s151, 4
        %s153 = scalar_lea.vmem %s0, %s152
        %s154 = smul.u32 2, %s14
        %s155 = smul.u32 2, %s14
        %p156 = scmp.lt.s32.totalorder %s155, 3
        %s157 = scalar_select %p156, %s155, 3
        %s158 = scalar_lea.vmem %s2, %s157
        %s159 = smul.u32 2, %s14
        %v161 = vld [vmem:[%s153] sm:$0x77]
        %v163 = vcombine.high %v161, %v161
        %v165 = vpack.c.bf16 %v161, %v161
        %v166 = vpack.c.bf16 %v163, %v163
        %v167 = vld [vmem:[#allocation2] sm:$0xf]
        %v168 = vld [vmem:[#allocation2 + $0x4] sm:$0x3]
        %v171 = vunpack.c.l.b16 %v167
        %v172 = vunpack.c.l.b16 %v168
        %v173 = vpack.c.b16 %v172, %v171
        %vm174 = vcmask 23552
        %v176 = vsel %vm174, %v173, 0
        %vm178 = vcmask 1040384
        %vm179 = vcmask 1041408
        %v180 = vsel %vm178, 4294967295, 65535
        %v181 = vsel %vm179, %v180, 0
        %v183 = vand.u32 %v165, %v181
        %v186 = vand.u32 %v166, %v181
        %188 = vmatprep.subr.bf16.mxu0 %v186
        %189 = vmatpush1.bf16.msra.mxu0 %v183
        %190 = vmatprep.subr.bf16.mxu0 0
        %191 = vmatpush1.bf16.msra.mxu0 0
        %192 = vmatprep.subr.bf16.mxu0 0
        %193 = vmatpush1.bf16.msra.mxu0 0
        %194 = vmatprep.subr.bf16.mxu0 0
        %195 = vmatpush1.bf16.msra.mxu0 0
        %196 = vmatprep.subr.bf16.mxu0 0
        %197 = vmatpush1.bf16.msra.mxu0 0
        %198 = vmatprep.subr.bf16.mxu0 0
        %199 = vmatpush1.bf16.msra.mxu0 0
        %200 = vmatprep.subr.bf16.mxu0 0
        %201 = vmatpush1.bf16.msra.mxu0 0
        %202 = vmatprep.subr.bf16.mxu0 0
        %203 = vmatpush1.bf16.msra.mxu0 0
        %204 = vmatprep.subr.bf16.mxu0 0
        %205 = vmatpush1.bf16.msra.mxu0 0
        %206 = vmatprep.subr.bf16.mxu0 0
        %207 = vmatpush1.bf16.msra.mxu0 0
        %208 = vmatprep.subr.bf16.mxu0 0
        %209 = vmatpush1.bf16.msra.mxu0 0
        %210 = vmatprep.subr.bf16.mxu0 0
        %211 = vmatpush1.bf16.msra.mxu0 0
        %212 = vmatprep.subr.bf16.mxu0 0
        %213 = vmatpush1.bf16.msra.mxu0 0
        %214 = vmatprep.subr.bf16.mxu0 0
        %215 = vmatpush1.bf16.msra.mxu0 0
        %216 = vmatprep.subr.bf16.mxu0 0
        %217 = vmatpush1.bf16.msra.mxu0 0
        %218 = vmatprep.subr.bf16.mxu0 0
        %219 = vmatpush1.bf16.msra.mxu0 0
        %220 = vmatprep.mubr.bf16.mxu0 0
        %221 = vmatmul.mubr.bf16.gmra.mrb[0].mxu0 %v176
        %v222 = vpop.f32.mrb[0].mxu0
        %v223 = vadd.f32 0.0, %v222
        %v224 = vpop.f32.mrb[0].mxu0
        %v225 = vadd.f32 0.0, %v224
        %v226 = vpop.f32.mrb[0].mxu0
        %v227 = vadd.f32 0.0, %v226
        %v228 = vpop.f32.mrb[0].mxu0
        %v229 = vadd.f32 0.0, %v228
        %230 = vdwg.mxu0
        %v231 = vmax.f32 %v223, 0.0
        %v232 = vmax.f32 %v225, 0.0
        %v233 = vmax.f32 %v227, 0.0
        %v234 = vmax.f32 %v229, 0.0
        %s235 = scalar_lea.vmem [#allocation2], 8
        %v236 = vld [vmem:[%s235] sm:$0xf]
        %v237 = vld [vmem:[%s235 + $0x4] sm:$0x3]
        %v238 = vpack.c.bf16 %v233, %v231
        %v239 = vpack.c.bf16 %v234, %v232
        %v242 = vunpack.c.l.b16 %v236
        %v243 = vunpack.c.l.b16 %v237
        %v244 = vpack.c.b16 %v243, %v242
        %vm245 = vcmask 89088
        %v247 = vsel %vm245, %v244, 0
        %vm249 = vcmask 1044480
        %vm250 = vcmask 1045504
        %v251 = vsel %vm249, 4294967295, 65535
        %v252 = vsel %vm250, %v251, 0
        %v254 = vand.u32 %v238, %v252
        %v257 = vand.u32 %v239, %v252
        %259 = vmatprep.subr.bf16.mxu0 %v257
        %260 = vmatpush1.bf16.msra.mxu0 %v254
        %261 = vmatprep.subr.bf16.mxu0 0
        %262 = vmatpush1.bf16.msra.mxu0 0
        %263 = vmatprep.subr.bf16.mxu0 0
        %264 = vmatpush1.bf16.msra.mxu0 0
        %265 = vmatprep.subr.bf16.mxu0 0
        %266 = vmatpush1.bf16.msra.mxu0 0
        %267 = vmatprep.subr.bf16.mxu0 0
        %268 = vmatpush1.bf16.msra.mxu0 0
        %269 = vmatprep.subr.bf16.mxu0 0
        %270 = vmatpush1.bf16.msra.mxu0 0
        %271 = vmatprep.subr.bf16.mxu0 0
        %272 = vmatpush1.bf16.msra.mxu0 0
        %273 = vmatprep.subr.bf16.mxu0 0
        %274 = vmatpush1.bf16.msra.mxu0 0
        %275 = vmatprep.subr.bf16.mxu0 0
        %276 = vmatpush1.bf16.msra.mxu0 0
        %277 = vmatprep.subr.bf16.mxu0 0
        %278 = vmatpush1.bf16.msra.mxu0 0
        %279 = vmatprep.subr.bf16.mxu0 0
        %280 = vmatpush1.bf16.msra.mxu0 0
        %281 = vmatprep.subr.bf16.mxu0 0
        %282 = vmatpush1.bf16.msra.mxu0 0
        %283 = vmatprep.subr.bf16.mxu0 0
        %284 = vmatpush1.bf16.msra.mxu0 0
        %285 = vmatprep.subr.bf16.mxu0 0
        %286 = vmatpush1.bf16.msra.mxu0 0
        %287 = vmatprep.subr.bf16.mxu0 0
        %288 = vmatpush1.bf16.msra.mxu0 0
        %289 = vmatprep.subr.bf16.mxu0 0
        %290 = vmatpush1.bf16.msra.mxu0 0
        %291 = vmatprep.mubr.bf16.mxu0 0
        %292 = vmatmul.mubr.bf16.gmra.mrb[0].mxu0 %v247
        %v293 = vpop.f32.mrb[0].mxu0
        %v294 = vadd.f32 0.0, %v293
        %v295 = vpop.f32.mrb[0].mxu0
        %v296 = vadd.f32 0.0, %v295
        %v297 = vpop.f32.mrb[0].mxu0
        %v298 = vadd.f32 0.0, %v297
        %v299 = vpop.f32.mrb[0].mxu0
        %v300 = vadd.f32 0.0, %v299
        %301 = vdwg.mxu0
        %v302 = vmax.f32 %v294, 0.0
        %v303 = vmax.f32 %v296, 0.0
        %v304 = vmax.f32 %v298, 0.0
        %v305 = vmax.f32 %v300, 0.0
        %s306 = scalar_lea.vmem [#allocation2], 16
        %v307 = vld [vmem:[%s306] sm:$0xf]
        %v308 = vld [vmem:[%s306 + $0x4] sm:$0x3]
        %v309 = vpack.c.bf16 %v304, %v302
        %v310 = vpack.c.bf16 %v305, %v303
        %v313 = vunpack.c.l.b16 %v307
        %v314 = vunpack.c.l.b16 %v308
        %v315 = vpack.c.b16 %v314, %v313
        %v317 = vsel %vm245, %v315, 0
        %v320 = vand.u32 %v309, %v252
        %v323 = vand.u32 %v310, %v252
        %325 = vmatprep.subr.bf16.mxu0 %v323
        %326 = vmatpush1.bf16.msra.mxu0 %v320
        %327 = vmatprep.subr.bf16.mxu0 0
        %328 = vmatpush1.bf16.msra.mxu0 0
        %329 = vmatprep.subr.bf16.mxu0 0
        %330 = vmatpush1.bf16.msra.mxu0 0
        %331 = vmatprep.subr.bf16.mxu0 0
        %332 = vmatpush1.bf16.msra.mxu0 0
        %333 = vmatprep.subr.bf16.mxu0 0
        %334 = vmatpush1.bf16.msra.mxu0 0
        %335 = vmatprep.subr.bf16.mxu0 0
        %336 = vmatpush1.bf16.msra.mxu0 0
        %337 = vmatprep.subr.bf16.mxu0 0
        %338 = vmatpush1.bf16.msra.mxu0 0
        %339 = vmatprep.subr.bf16.mxu0 0
        %340 = vmatpush1.bf16.msra.mxu0 0
        %341 = vmatprep.subr.bf16.mxu0 0
        %342 = vmatpush1.bf16.msra.mxu0 0
        %343 = vmatprep.subr.bf16.mxu0 0
        %344 = vmatpush1.bf16.msra.mxu0 0
        %345 = vmatprep.subr.bf16.mxu0 0
        %346 = vmatpush1.bf16.msra.mxu0 0
        %347 = vmatprep.subr.bf16.mxu0 0
        %348 = vmatpush1.bf16.msra.mxu0 0
        %349 = vmatprep.subr.bf16.mxu0 0
        %350 = vmatpush1.bf16.msra.mxu0 0
        %351 = vmatprep.subr.bf16.mxu0 0
        %352 = vmatpush1.bf16.msra.mxu0 0
        %353 = vmatprep.subr.bf16.mxu0 0
        %354 = vmatpush1.bf16.msra.mxu0 0
        %355 = vmatprep.subr.bf16.mxu0 0
        %356 = vmatpush1.bf16.msra.mxu0 0
        %357 = vmatprep.mubr.bf16.mxu0 0
        %358 = vmatmul.mubr.bf16.gmra.mrb[0].mxu0 %v317
        %v359 = vpop.f32.mrb[0].mxu0
        %v360 = vadd.f32 0.0, %v359
        %v361 = vpop.f32.mrb[0].mxu0
        %v362 = vadd.f32 0.0, %v361
        %v363 = vpop.f32.mrb[0].mxu0
        %v364 = vadd.f32 0.0, %v363
        %v365 = vpop.f32.mrb[0].mxu0
        %v366 = vadd.f32 0.0, %v365
        %367 = vdwg.mxu0
        %v368 = vmax.f32 %v360, 0.0
        %v369 = vmax.f32 %v362, 0.0
        %v370 = vmax.f32 %v364, 0.0
        %v371 = vmax.f32 %v366, 0.0
        %v372 = vadd.f32 %v231, %v368
        %v373 = vadd.f32 %v232, %v369
        %v374 = vadd.f32 %v233, %v370
        %v375 = vadd.f32 %v234, %v371
        %s376 = scalar_lea.vmem [#allocation2], 24
        %v377 = vld [vmem:[%s376] sm:$0xf]
        %v378 = vld [vmem:[%s376 + $0x4] sm:$0x3]
        %v379 = vpack.c.bf16 %v374, %v372
        %v380 = vpack.c.bf16 %v375, %v373
        %v383 = vunpack.c.l.b16 %v377
        %v384 = vunpack.c.l.b16 %v378
        %v385 = vpack.c.b16 %v384, %v383
        %v387 = vsel %vm245, %v385, 0
        %v390 = vand.u32 %v379, %v252
        %v393 = vand.u32 %v380, %v252
        %395 = vmatprep.subr.bf16.mxu0 %v393
        %396 = vmatpush1.bf16.msra.mxu0 %v390
        %397 = vmatprep.subr.bf16.mxu0 0
        %398 = vmatpush1.bf16.msra.mxu0 0
        %399 = vmatprep.subr.bf16.mxu0 0
        %400 = vmatpush1.bf16.msra.mxu0 0
        %401 = vmatprep.subr.bf16.mxu0 0
        %402 = vmatpush1.bf16.msra.mxu0 0
        %403 = vmatprep.subr.bf16.mxu0 0
        %404 = vmatpush1.bf16.msra.mxu0 0
        %405 = vmatprep.subr.bf16.mxu0 0
        %406 = vmatpush1.bf16.msra.mxu0 0
        %407 = vmatprep.subr.bf16.mxu0 0
        %408 = vmatpush1.bf16.msra.mxu0 0
        %409 = vmatprep.subr.bf16.mxu0 0
        %410 = vmatpush1.bf16.msra.mxu0 0
        %411 = vmatprep.subr.bf16.mxu0 0
        %412 = vmatpush1.bf16.msra.mxu0 0
        %413 = vmatprep.subr.bf16.mxu0 0
        %414 = vmatpush1.bf16.msra.mxu0 0
        %415 = vmatprep.subr.bf16.mxu0 0
        %416 = vmatpush1.bf16.msra.mxu0 0
        %417 = vmatprep.subr.bf16.mxu0 0
        %418 = vmatpush1.bf16.msra.mxu0 0
        %419 = vmatprep.subr.bf16.mxu0 0
        %420 = vmatpush1.bf16.msra.mxu0 0
        %421 = vmatprep.subr.bf16.mxu0 0
        %422 = vmatpush1.bf16.msra.mxu0 0
        %423 = vmatprep.subr.bf16.mxu0 0
        %424 = vmatpush1.bf16.msra.mxu0 0
        %425 = vmatprep.subr.bf16.mxu0 0
        %426 = vmatpush1.bf16.msra.mxu0 0
        %427 = vmatprep.mubr.bf16.mxu0 0
        %428 = vmatmul.mubr.bf16.gmra.mrb[0].mxu0 %v387
        %v429 = vpop.f32.mrb[0].mxu0
        %v430 = vadd.f32 0.0, %v429
        %v431 = vpop.f32.mrb[0].mxu0
        %v432 = vadd.f32 0.0, %v431
        %v433 = vpop.f32.mrb[0].mxu0
        %v434 = vadd.f32 0.0, %v433
        %v435 = vpop.f32.mrb[0].mxu0
        %v436 = vadd.f32 0.0, %v435
        %437 = vdwg.mxu0
        %v438 = vmax.f32 %v430, 0.0
        %v439 = vmax.f32 %v432, 0.0
        %v440 = vmax.f32 %v434, 0.0
        %v441 = vmax.f32 %v436, 0.0
        %s442 = scalar_lea.vmem [#allocation2], 32
        %v443 = vld [vmem:[%s442] sm:$0xf]
        %v444 = vld [vmem:[%s442 + $0x4] sm:$0x3]
        %v445 = vpack.c.bf16 %v440, %v438
        %v446 = vpack.c.bf16 %v441, %v439
        %v449 = vunpack.c.l.b16 %v443
        %v450 = vunpack.c.l.b16 %v444
        %v451 = vpack.c.b16 %v450, %v449
        %v453 = vsel %vm245, %v451, 0
        %v456 = vand.u32 %v445, %v252
        %v459 = vand.u32 %v446, %v252
        %461 = vmatprep.subr.bf16.mxu0 %v459
        %462 = vmatpush1.bf16.msra.mxu0 %v456
        %463 = vmatprep.subr.bf16.mxu0 0
        %464 = vmatpush1.bf16.msra.mxu0 0
        %465 = vmatprep.subr.bf16.mxu0 0
        %466 = vmatpush1.bf16.msra.mxu0 0
        %467 = vmatprep.subr.bf16.mxu0 0
        %468 = vmatpush1.bf16.msra.mxu0 0
        %469 = vmatprep.subr.bf16.mxu0 0
        %470 = vmatpush1.bf16.msra.mxu0 0
        %471 = vmatprep.subr.bf16.mxu0 0
        %472 = vmatpush1.bf16.msra.mxu0 0
        %473 = vmatprep.subr.bf16.mxu0 0
        %474 = vmatpush1.bf16.msra.mxu0 0
        %475 = vmatprep.subr.bf16.mxu0 0
        %476 = vmatpush1.bf16.msra.mxu0 0
        %477 = vmatprep.subr.bf16.mxu0 0
        %478 = vmatpush1.bf16.msra.mxu0 0
        %479 = vmatprep.subr.bf16.mxu0 0
        %480 = vmatpush1.bf16.msra.mxu0 0
        %481 = vmatprep.subr.bf16.mxu0 0
        %482 = vmatpush1.bf16.msra.mxu0 0
        %483 = vmatprep.subr.bf16.mxu0 0
        %484 = vmatpush1.bf16.msra.mxu0 0
        %485 = vmatprep.subr.bf16.mxu0 0
        %486 = vmatpush1.bf16.msra.mxu0 0
        %487 = vmatprep.subr.bf16.mxu0 0
        %488 = vmatpush1.bf16.msra.mxu0 0
        %489 = vmatprep.subr.bf16.mxu0 0
        %490 = vmatpush1.bf16.msra.mxu0 0
        %491 = vmatprep.subr.bf16.mxu0 0
        %492 = vmatpush1.bf16.msra.mxu0 0
        %493 = vmatprep.mubr.bf16.mxu0 0
        %494 = vmatmul.mubr.bf16.gmra.mrb[0].mxu0 %v453
        %v495 = vpop.f32.mrb[0].mxu0
        %v496 = vadd.f32 0.0, %v495
        %v497 = vpop.f32.mrb[0].mxu0
        %v498 = vadd.f32 0.0, %v497
        %v499 = vpop.f32.mrb[0].mxu0
        %v500 = vadd.f32 0.0, %v499
        %v501 = vpop.f32.mrb[0].mxu0
        %v502 = vadd.f32 0.0, %v501
        %503 = vdwg.mxu0
        %v504 = vmax.f32 %v496, 0.0
        %v505 = vmax.f32 %v498, 0.0
        %v506 = vmax.f32 %v500, 0.0
        %v507 = vmax.f32 %v502, 0.0
        %v508 = vadd.f32 %v372, %v504
        %v509 = vadd.f32 %v373, %v505
        %v510 = vadd.f32 %v374, %v506
        %v511 = vadd.f32 %v375, %v507
        %s512 = scalar_lea.vmem [#allocation2], 40
        %v513 = vld [vmem:[%s512] sm:$0xf]
        %v514 = vld [vmem:[%s512 + $0x4] sm:$0x3]
        %v515 = vpack.c.bf16 %v510, %v508
        %v516 = vpack.c.bf16 %v511, %v509
        %v519 = vunpack.c.l.b16 %v513
        %v520 = vunpack.c.l.b16 %v514
        %v521 = vpack.c.b16 %v520, %v519
        %v523 = vsel %vm245, %v521, 0
        %v526 = vand.u32 %v515, %v252
        %v529 = vand.u32 %v516, %v252
        %531 = vmatprep.subr.bf16.mxu0 %v529
        %532 = vmatpush1.bf16.msra.mxu0 %v526
        %533 = vmatprep.subr.bf16.mxu0 0
        %534 = vmatpush1.bf16.msra.mxu0 0
        %535 = vmatprep.subr.bf16.mxu0 0
        %536 = vmatpush1.bf16.msra.mxu0 0
        %537 = vmatprep.subr.bf16.mxu0 0
        %538 = vmatpush1.bf16.msra.mxu0 0
        %539 = vmatprep.subr.bf16.mxu0 0
        %540 = vmatpush1.bf16.msra.mxu0 0
        %541 = vmatprep.subr.bf16.mxu0 0
        %542 = vmatpush1.bf16.msra.mxu0 0
        %543 = vmatprep.subr.bf16.mxu0 0
        %544 = vmatpush1.bf16.msra.mxu0 0
        %545 = vmatprep.subr.bf16.mxu0 0
        %546 = vmatpush1.bf16.msra.mxu0 0
        %547 = vmatprep.subr.bf16.mxu0 0
        %548 = vmatpush1.bf16.msra.mxu0 0
        %549 = vmatprep.subr.bf16.mxu0 0
        %550 = vmatpush1.bf16.msra.mxu0 0
        %551 = vmatprep.subr.bf16.mxu0 0
        %552 = vmatpush1.bf16.msra.mxu0 0
        %553 = vmatprep.subr.bf16.mxu0 0
        %554 = vmatpush1.bf16.msra.mxu0 0
        %555 = vmatprep.subr.bf16.mxu0 0
        %556 = vmatpush1.bf16.msra.mxu0 0
        %557 = vmatprep.subr.bf16.mxu0 0
        %558 = vmatpush1.bf16.msra.mxu0 0
        %559 = vmatprep.subr.bf16.mxu0 0
        %560 = vmatpush1.bf16.msra.mxu0 0
        %561 = vmatprep.subr.bf16.mxu0 0
        %562 = vmatpush1.bf16.msra.mxu0 0
        %563 = vmatprep.mubr.bf16.mxu0 0
        %564 = vmatmul.mubr.bf16.gmra.mrb[0].mxu0 %v523
        %v565 = vpop.f32.mrb[0].mxu0
        %v566 = vadd.f32 0.0, %v565
        %v567 = vpop.f32.mrb[0].mxu0
        %v568 = vadd.f32 0.0, %v567
        %v569 = vpop.f32.mrb[0].mxu0
        %v570 = vadd.f32 0.0, %v569
        %v571 = vpop.f32.mrb[0].mxu0
        %v572 = vadd.f32 0.0, %v571
        %573 = vdwg.mxu0
        %v574 = vmax.f32 %v566, 0.0
        %v575 = vmax.f32 %v568, 0.0
        %v576 = vmax.f32 %v570, 0.0
        %v577 = vmax.f32 %v572, 0.0
        %s578 = scalar_lea.vmem [#allocation2], 48
        %v579 = vld [vmem:[%s578] sm:$0xf]
        %v580 = vld [vmem:[%s578 + $0x4] sm:$0x3]
        %v581 = vpack.c.bf16 %v576, %v574
        %v582 = vpack.c.bf16 %v577, %v575
        %v585 = vunpack.c.l.b16 %v579
        %v586 = vunpack.c.l.b16 %v580
        %v587 = vpack.c.b16 %v586, %v585
        %v589 = vsel %vm245, %v587, 0
        %v592 = vand.u32 %v581, %v252
        %v595 = vand.u32 %v582, %v252
        %597 = vmatprep.subr.bf16.mxu0 %v595
        %598 = vmatpush1.bf16.msra.mxu0 %v592
        %599 = vmatprep.subr.bf16.mxu0 0
        %600 = vmatpush1.bf16.msra.mxu0 0
        %601 = vmatprep.subr.bf16.mxu0 0
        %602 = vmatpush1.bf16.msra.mxu0 0
        %603 = vmatprep.subr.bf16.mxu0 0
        %604 = vmatpush1.bf16.msra.mxu0 0
        %605 = vmatprep.subr.bf16.mxu0 0
        %606 = vmatpush1.bf16.msra.mxu0 0
        %607 = vmatprep.subr.bf16.mxu0 0
        %608 = vmatpush1.bf16.msra.mxu0 0
        %609 = vmatprep.subr.bf16.mxu0 0
        %610 = vmatpush1.bf16.msra.mxu0 0
        %611 = vmatprep.subr.bf16.mxu0 0
        %612 = vmatpush1.bf16.msra.mxu0 0
        %613 = vmatprep.subr.bf16.mxu0 0
        %614 = vmatpush1.bf16.msra.mxu0 0
        %615 = vmatprep.subr.bf16.mxu0 0
        %616 = vmatpush1.bf16.msra.mxu0 0
        %617 = vmatprep.subr.bf16.mxu0 0
        %618 = vmatpush1.bf16.msra.mxu0 0
        %619 = vmatprep.subr.bf16.mxu0 0
        %620 = vmatpush1.bf16.msra.mxu0 0
        %621 = vmatprep.subr.bf16.mxu0 0
        %622 = vmatpush1.bf16.msra.mxu0 0
        %623 = vmatprep.subr.bf16.mxu0 0
        %624 = vmatpush1.bf16.msra.mxu0 0
        %625 = vmatprep.subr.bf16.mxu0 0
        %626 = vmatpush1.bf16.msra.mxu0 0
        %627 = vmatprep.subr.bf16.mxu0 0
        %628 = vmatpush1.bf16.msra.mxu0 0
        %629 = vmatprep.mubr.bf16.mxu0 0
        %630 = vmatmul.mubr.bf16.gmra.mrb[0].mxu0 %v589
        %v631 = vpop.f32.mrb[0].mxu0
        %v632 = vadd.f32 0.0, %v631
        %v633 = vpop.f32.mrb[0].mxu0
        %v634 = vadd.f32 0.0, %v633
        %v635 = vpop.f32.mrb[0].mxu0
        %v636 = vadd.f32 0.0, %v635
        %v637 = vpop.f32.mrb[0].mxu0
        %v638 = vadd.f32 0.0, %v637
        %639 = vdwg.mxu0
        %v640 = vmax.f32 %v632, 0.0
        %v641 = vmax.f32 %v634, 0.0
        %v642 = vmax.f32 %v636, 0.0
        %v643 = vmax.f32 %v638, 0.0
        %v644 = vadd.f32 %v508, %v640
        %v645 = vadd.f32 %v509, %v641
        %v646 = vadd.f32 %v510, %v642
        %v647 = vadd.f32 %v511, %v643
        %s648 = scalar_lea.vmem [#allocation2], 56
        %v649 = vld [vmem:[%s648] sm:$0xf]
        %v650 = vld [vmem:[%s648 + $0x4] sm:$0x3]
        %v651 = vpack.c.bf16 %v646, %v644
        %v652 = vpack.c.bf16 %v647, %v645
        %v655 = vunpack.c.l.b16 %v649
        %v656 = vunpack.c.l.b16 %v650
        %v657 = vpack.c.b16 %v656, %v655
        %v659 = vsel %vm245, %v657, 0
        %v662 = vand.u32 %v651, %v252
        %v665 = vand.u32 %v652, %v252
        %667 = vmatprep.subr.bf16.mxu0 %v665
        %668 = vmatpush1.bf16.msra.mxu0 %v662
        %669 = vmatprep.subr.bf16.mxu0 0
        %670 = vmatpush1.bf16.msra.mxu0 0
        %671 = vmatprep.subr.bf16.mxu0 0
        %672 = vmatpush1.bf16.msra.mxu0 0
        %673 = vmatprep.subr.bf16.mxu0 0
        %674 = vmatpush1.bf16.msra.mxu0 0
        %675 = vmatprep.subr.bf16.mxu0 0
        %676 = vmatpush1.bf16.msra.mxu0 0
        %677 = vmatprep.subr.bf16.mxu0 0
        %678 = vmatpush1.bf16.msra.mxu0 0
        %679 = vmatprep.subr.bf16.mxu0 0
        %680 = vmatpush1.bf16.msra.mxu0 0
        %681 = vmatprep.subr.bf16.mxu0 0
        %682 = vmatpush1.bf16.msra.mxu0 0
        %683 = vmatprep.subr.bf16.mxu0 0
        %684 = vmatpush1.bf16.msra.mxu0 0
        %685 = vmatprep.subr.bf16.mxu0 0
        %686 = vmatpush1.bf16.msra.mxu0 0
        %687 = vmatprep.subr.bf16.mxu0 0
        %688 = vmatpush1.bf16.msra.mxu0 0
        %689 = vmatprep.subr.bf16.mxu0 0
        %690 = vmatpush1.bf16.msra.mxu0 0
        %691 = vmatprep.subr.bf16.mxu0 0
        %692 = vmatpush1.bf16.msra.mxu0 0
        %693 = vmatprep.subr.bf16.mxu0 0
        %694 = vmatpush1.bf16.msra.mxu0 0
        %695 = vmatprep.subr.bf16.mxu0 0
        %696 = vmatpush1.bf16.msra.mxu0 0
        %697 = vmatprep.subr.bf16.mxu0 0
        %698 = vmatpush1.bf16.msra.mxu0 0
        %699 = vmatprep.mubr.bf16.mxu0 0
        %700 = vmatmul.mubr.bf16.gmra.mrb[0].mxu0 %v659
        %v701 = vpop.f32.mrb[0].mxu0
        %v702 = vadd.f32 0.0, %v701
        %v703 = vpop.f32.mrb[0].mxu0
        %v704 = vadd.f32 0.0, %v703
        %v705 = vpop.f32.mrb[0].mxu0
        %v706 = vadd.f32 0.0, %v705
        %v707 = vpop.f32.mrb[0].mxu0
        %v708 = vadd.f32 0.0, %v707
        %709 = vdwg.mxu0
        %v710 = vmax.f32 %v702, 0.0
        %v711 = vmax.f32 %v704, 0.0
        %v712 = vmax.f32 %v706, 0.0
        %v713 = vmax.f32 %v708, 0.0
        %s714 = scalar_lea.vmem [#allocation2], 64
        %v715 = vld [vmem:[%s714] sm:$0xf]
        %v716 = vld [vmem:[%s714 + $0x4] sm:$0x3]
        %v717 = vpack.c.bf16 %v712, %v710
        %v718 = vpack.c.bf16 %v713, %v711
        %v721 = vunpack.c.l.b16 %v715
        %v722 = vunpack.c.l.b16 %v716
        %v723 = vpack.c.b16 %v722, %v721
        %v725 = vsel %vm245, %v723, 0
        %v728 = vand.u32 %v717, %v252
        %v731 = vand.u32 %v718, %v252
        %733 = vmatprep.subr.bf16.mxu0 %v731
        %734 = vmatpush1.bf16.msra.mxu0 %v728
        %735 = vmatprep.subr.bf16.mxu0 0
        %736 = vmatpush1.bf16.msra.mxu0 0
        %737 = vmatprep.subr.bf16.mxu0 0
        %738 = vmatpush1.bf16.msra.mxu0 0
        %739 = vmatprep.subr.bf16.mxu0 0
        %740 = vmatpush1.bf16.msra.mxu0 0
        %741 = vmatprep.subr.bf16.mxu0 0
        %742 = vmatpush1.bf16.msra.mxu0 0
        %743 = vmatprep.subr.bf16.mxu0 0
        %744 = vmatpush1.bf16.msra.mxu0 0
        %745 = vmatprep.subr.bf16.mxu0 0
        %746 = vmatpush1.bf16.msra.mxu0 0
        %747 = vmatprep.subr.bf16.mxu0 0
        %748 = vmatpush1.bf16.msra.mxu0 0
        %749 = vmatprep.subr.bf16.mxu0 0
        %750 = vmatpush1.bf16.msra.mxu0 0
        %751 = vmatprep.subr.bf16.mxu0 0
        %752 = vmatpush1.bf16.msra.mxu0 0
        %753 = vmatprep.subr.bf16.mxu0 0
        %754 = vmatpush1.bf16.msra.mxu0 0
        %755 = vmatprep.subr.bf16.mxu0 0
        %756 = vmatpush1.bf16.msra.mxu0 0
        %757 = vmatprep.subr.bf16.mxu0 0
        %758 = vmatpush1.bf16.msra.mxu0 0
        %759 = vmatprep.subr.bf16.mxu0 0
        %760 = vmatpush1.bf16.msra.mxu0 0
        %761 = vmatprep.subr.bf16.mxu0 0
        %762 = vmatpush1.bf16.msra.mxu0 0
        %763 = vmatprep.subr.bf16.mxu0 0
        %764 = vmatpush1.bf16.msra.mxu0 0
        %765 = vmatprep.mubr.bf16.mxu0 0
        %766 = vmatmul.mubr.bf16.gmra.mrb[0].mxu0 %v725
        %v767 = vpop.f32.mrb[0].mxu0
        %v768 = vadd.f32 0.0, %v767
        %v769 = vpop.f32.mrb[0].mxu0
        %v770 = vadd.f32 0.0, %v769
        %v771 = vpop.f32.mrb[0].mxu0
        %v772 = vadd.f32 0.0, %v771
        %v773 = vpop.f32.mrb[0].mxu0
        %v774 = vadd.f32 0.0, %v773
        %775 = vdwg.mxu0
        %v776 = vmax.f32 %v768, 0.0
        %v777 = vmax.f32 %v770, 0.0
        %v778 = vmax.f32 %v772, 0.0
        %v779 = vmax.f32 %v774, 0.0
        %v780 = vadd.f32 %v644, %v776
        %v781 = vadd.f32 %v645, %v777
        %v782 = vadd.f32 %v646, %v778
        %v783 = vadd.f32 %v647, %v779
        %s784 = scalar_lea.vmem [#allocation2], 72
        %v785 = vld [vmem:[%s784] sm:$0x1]
        %v786 = vpack.c.bf16 %v782, %v780
        %v787 = vpack.c.bf16 %v783, %v781
        %v789 = vsel %vm245, %v785, 0
        %v792 = vand.u32 %v786, %v252
        %v795 = vand.u32 %v787, %v252
        %797 = vmatprep.subr.bf16.mxu0 %v795
        %798 = vmatpush1.bf16.msra.mxu0 %v792
        %799 = vmatprep.subr.bf16.mxu0 0
        %800 = vmatpush1.bf16.msra.mxu0 0
        %801 = vmatprep.subr.bf16.mxu0 0
        %802 = vmatpush1.bf16.msra.mxu0 0
        %803 = vmatprep.subr.bf16.mxu0 0
        %804 = vmatpush1.bf16.msra.mxu0 0
        %805 = vmatprep.subr.bf16.mxu0 0
        %806 = vmatpush1.bf16.msra.mxu0 0
        %807 = vmatprep.subr.bf16.mxu0 0
        %808 = vmatpush1.bf16.msra.mxu0 0
        %809 = vmatprep.subr.bf16.mxu0 0
        %810 = vmatpush1.bf16.msra.mxu0 0
        %811 = vmatprep.subr.bf16.mxu0 0
        %812 = vmatpush1.bf16.msra.mxu0 0
        %813 = vmatprep.subr.bf16.mxu0 0
        %814 = vmatpush1.bf16.msra.mxu0 0
        %815 = vmatprep.subr.bf16.mxu0 0
        %816 = vmatpush1.bf16.msra.mxu0 0
        %817 = vmatprep.subr.bf16.mxu0 0
        %818 = vmatpush1.bf16.msra.mxu0 0
        %819 = vmatprep.subr.bf16.mxu0 0
        %820 = vmatpush1.bf16.msra.mxu0 0
        %821 = vmatprep.subr.bf16.mxu0 0
        %822 = vmatpush1.bf16.msra.mxu0 0
        %823 = vmatprep.subr.bf16.mxu0 0
        %824 = vmatpush1.bf16.msra.mxu0 0
        %825 = vmatprep.subr.bf16.mxu0 0
        %826 = vmatpush1.bf16.msra.mxu0 0
        %827 = vmatprep.subr.bf16.mxu0 0
        %828 = vmatpush1.bf16.msra.mxu0 0
        %829 = vmatprep.mubr.bf16.mxu0 0
        %830 = vmatmul.mubr.bf16.gmra.mrb[0].mxu0 %v789
        %v831 = vpop.f32.mrb[0].mxu0
        %v832 = vadd.f32 0.0, %v831
        %v833 = vpop.f32.mrb[0].mxu0
        %v834 = vadd.f32 0.0, %v833
        %v835 = vpop.f32.mrb[0].mxu0
        %v836 = vpop.f32.mrb[0].mxu0
        %837 = vdwg.mxu0
        %v840 = vcombine.low %v832, %v834
        %v842 = vunpack.c.l.s4 1966171168
        %v843 = vunpack.c.0.s8 %v842
        %v844 = vlaneseq
        %v845 = vshrl.u32 %v844, 7
        %v846 = vsub.s32 %v843, %v845
        %v847 = vrot.slane %v840, %v846
        %v849 = vunpack.c.l.s4 1966171168
        %v850 = vunpack.c.0.s8 %v849
        %v851 = vlaneseq
        %v852 = vshrl.u32 %v851, 7
        %v853 = vsub.s32 %v850, %v852
        %v854 = vrot.slane %v847, %v853
        %v856 = vlaneseq
        %vm857 = vcmp.ge.s32.totalorder %v856, 0
        %vm858 = vcmp.lt.s32.totalorder %v856, 256
        %vm859 = vmand %vm857, %vm858
        %860 = vst.msk [vmem:[%s158] sm:$0x3] %vm859, %v854
        %s861 = smul.u32 2, %s14
        %p862 = scmp.lt.s32.totalorder %s861, 3
        %s863 = scalar_select %p862, %s861, 3
        %s864 = scalar_lea.vmem %s2, %s863
        // Predicated region
        $region33: #{ritznet_forward.1} parent=27 // pred_check
          %p865 = pneg %p79
        $region34: #{ritznet_forward.1} parent=27 // pred_check_branch
          %867 = sbr.rel (%p865) target = $region36
        $region35: #{ritznet_forward.1} parent=27 // pred_region
          %s868 = smul.u32 2, %s14
        $region36: #{ritznet_forward.1} parent=27 // pred_fallthru
          _
      $region28: #{ritznet_forward.1} parent=5 // pred_fallthru
        _
      %p869 = scmp.le.s32.totalorder 2, %s9
      // Predicated region
      $region37: #{ritznet_forward.1} parent=5 // pred_check
        %p870 = pneg %p869
      $region38: #{ritznet_forward.1} parent=5 // pred_check_branch
        %872 = sbr.rel (%p870) target = $region40
      $region39: #{ritznet_forward.1} parent=5 // pred_region
        %s873 = ssub.s32 %s9, 2
        // Predicated region
        $region41: #{ritznet_forward.1} parent=39 // pred_check
          %p874 = pneg %p85
        $region42: #{ritznet_forward.1} parent=39 // pred_check_branch
          %876 = sbr.rel (%p874) target = $region44
        $region43: #{ritznet_forward.1} parent=39 // pred_region
          %s877 = smul.u32 2, %s15
          %p878 = scmp.lt.s32.totalorder %s877, 3
          %s879 = scalar_select %p878, %s877, 3
          %s880 = scalar_lea.vmem %s2, %s879
        $region44: #{ritznet_forward.1} parent=39 // pred_fallthru
          _
      $region40: #{ritznet_forward.1} parent=5 // pred_fallthru
        _
    $region6: #{ritznet_forward.1} parent=1 // loop_footer
      %s13 = sadd.s32 1, %s9
    $region7: #{ritznet_forward.1} parent=1 // loop_footer_branch
      %8 = sbr.rel target = $region3
    $region8: #{ritznet_forward.1} parent=1 // loop_exit
      _
    %881 = vsyncpa [#allocation3], 1
    %s882 = scalar_lea.sflag [#allocation3], 1
    %883 = vsyncpa %s882, 1

</llo_original>
